<compile_context>
chip_gen: v6e
topology: v6e:2x2x1
jax: 0.10.0
libtpu: 0.0.40
codegen_flags: <defaults>
</compile_context>

<pallas_src>
import functools

import jax
import jax.numpy as jnp
from jax.experimental import pallas as pl
from jax.experimental.pallas import tpu as pltpu

LANE = 128


def _round_up(n, m):
    return (n + m - 1) // m * m


def _cdiv(a, b):
    return -(-a // b)


def _default_bf16_epilogue():
    """bf16 bias/ReLU epilogue on chips whose VPU handles bf16 natively
    (v6e / v7x); keep the f32 epilogue on older generations (<= v5e)."""
    try:
        kind = jax.devices()[0].device_kind.lower()
    except Exception:
        return False
    return not any(v in kind for v in ("v2", "v3", "v4", "v5"))


# --------------------------------------------------------------------------
# Kernel
# --------------------------------------------------------------------------
def mlp_kernel(x_ref, w1_ref, wmid_ref, bmid_ref, w6_ref, b6_ref, o_ref, *,
               bf16_epilogue):
    """Fused forward pass: 5x (Linear[BN folded] -> ReLU) + final Linear.

    x_ref   : [TB, F]       f32   batch tile (cast to bf16 for the MXU here)
    w1_ref  : [F, 128]      bf16  layer-1 weight (BN folded)
    wmid_ref: [4, 128, 128] bf16  layers 2..5 weights, zero-padded to 128 lanes
    bmid_ref: [5, 128]      f32   biases of layers 1..5 (BN shift folded)
    w6_ref  : [128, F]      bf16  output-layer weight
    b6_ref  : [1, F]        f32   output-layer bias
    o_ref   : [TB, F]       bf16  output tile
    """
    b_mid = bmid_ref[...]                                # [5, 128] f32 (tiny)
    if bf16_epilogue:
        b_mid = b_mid.astype(jnp.bfloat16)

    def hidden(h, w, b):
        # MXU matmul in bf16 with f32 accumulation.
        acc = jnp.dot(h, w, preferred_element_type=jnp.float32)
        if bf16_epilogue:
            # v6e/v7x: bias + ReLU in bf16 (half the VALU work, no extra cast).
            return jnp.maximum(acc.astype(jnp.bfloat16) + b, 0)
        # v5e and older (no bf16 VPU): f32 epilogue, one cast feeding the MXU.
        return jnp.maximum(acc + b, 0.0).astype(jnp.bfloat16)

    h = x_ref[...].astype(jnp.bfloat16)                  # [TB, F]
    h = hidden(h, w1_ref[...], b_mid[0:1])               # F   -> 128
    for i in range(4):                                   # 128->64->32->64->128
        h = hidden(h, wmid_ref[i], b_mid[i + 1:i + 2])
    y = jnp.dot(h, w6_ref[...], preferred_element_type=jnp.float32)
    y = y + b6_ref[...]                                  # 128 -> F, no ReLU
    o_ref[...] = y.astype(o_ref.dtype)                   # bf16 writeback


# --------------------------------------------------------------------------
# Wrapper
# --------------------------------------------------------------------------
def flight_prediction_mlp(x, fused_params, *, tb=2048, bf16_epilogue=None):
    """x: [B, F] float32.  fused_params: output of prepare_params().
    Returns [B, F] bfloat16 (caller casts to f32 only if needed)."""
    B, F = x.shape
    w1, wmid, bmid, w6, b6 = fused_params
    assert w1.shape == (F, LANE) and w6.shape == (LANE, F)

    if bf16_epilogue is None:
        bf16_epilogue = _default_bf16_epilogue()

    # Batch tile: multiple of 8 (sublane alignment); aim for >= 2 grid steps
    # whenever the batch allows it so the "parallel" axis can be split across
    # v7x's two TensorCores; then even-split to minimize batch padding.
    tb = max(8, min(tb, _round_up(_cdiv(B, 2), 8)))
    n_steps = max(1, _cdiv(B, tb))
    tb = _round_up(_cdiv(B, n_steps), 8)
    Bp = n_steps * tb

    x_pad = x if Bp == B else jnp.zeros((Bp, F), x.dtype).at[:B].set(x)

    x_spec = pl.BlockSpec((tb, F), lambda i: (i, 0))
    out_spec = pl.BlockSpec((tb, F), lambda i: (i, 0))
    # Constant block indices -> parameters stay resident in VMEM across steps.
    param_specs = [
        pl.BlockSpec(w1.shape, lambda i: (0, 0)),
        pl.BlockSpec(wmid.shape, lambda i: (0, 0, 0)),
        pl.BlockSpec(bmid.shape, lambda i: (0, 0)),
        pl.BlockSpec(w6.shape, lambda i: (0, 0)),
        pl.BlockSpec(b6.shape, lambda i: (0, 0)),
    ]

    out = pl.pallas_call(
        functools.partial(mlp_kernel, bf16_epilogue=bf16_epilogue),
        out_shape=jax.ShapeDtypeStruct((Bp, F), jnp.bfloat16),
        grid_spec=pltpu.PrefetchScalarGridSpec(
            num_scalar_prefetch=0,
            grid=(n_steps,),
            in_specs=[x_spec] + param_specs,
            out_specs=out_spec,
        ),
        compiler_params=pltpu.CompilerParams(
            dimension_semantics=("parallel",),        # megacore split on v7x
            vmem_limit_bytes=48 * 1024 * 1024,        # headroom for big tb (v5e)
        ),
    )(x_pad, w1, wmid, bmid, w6, b6)

    return out if Bp == B else out[:B]


# --------------------------------------------------------------------------
# Parameters: raw (PyTorch-like) and fused (BN folded + padded + stacked)
# --------------------------------------------------------------------------
def init_raw_params(key, input_size):
    """Synthetic parameters matching the PyTorch module's shapes."""
    dims = [input_size, 128, 64, 32, 64, 128, input_size]
    raw = []
    for i in range(6):
        d_in, d_out = dims[i], dims[i + 1]
        key, kw, kb = jax.random.split(key, 3)
        bound = 1.0 / (d_in ** 0.5)
        layer = {
            "w": jax.random.uniform(kw, (d_in, d_out), jnp.float32, -bound, bound),
            "b": jax.random.uniform(kb, (d_out,), jnp.float32, -bound, bound),
        }
        if i < 5:  # BatchNorm1d(d_out) params + running stats
            key, kg, kbt, km, kv = jax.random.split(key, 5)
            layer["gamma"] = 1.0 + 0.1 * jax.random.normal(kg, (d_out,), jnp.float32)
            layer["beta"] = 0.1 * jax.random.normal(kbt, (d_out,), jnp.float32)
            layer["mean"] = 0.1 * jax.random.normal(km, (d_out,), jnp.float32)
            layer["var"] = jnp.abs(
                1.0 + 0.1 * jax.random.normal(kv, (d_out,), jnp.float32))
        raw.append(layer)
    return raw


def prepare_params(raw, eps=1e-5):
    """Fold BN (eval) into Linears in f32, pad hidden widths to 128 lanes,
    stack interior weights/biases, and cast weights to bf16 (MXU dtype)."""
    folded = []
    for layer in raw:
        w = layer["w"].astype(jnp.float32)
        b = layer["b"].astype(jnp.float32)
        if "gamma" in layer:
            scale = layer["gamma"] / jnp.sqrt(layer["var"] + eps)
            shift = layer["beta"] - layer["mean"] * scale
            w = w * scale[None, :]
            b = b * scale + shift
        folded.append((w, b))

    def pad2(w):
        out = jnp.zeros((LANE, LANE), jnp.float32)
        return out.at[:w.shape[0], :w.shape[1]].set(w)

    def pad1(b):
        return jnp.zeros((LANE,), jnp.float32).at[:b.shape[0]].set(b)

    w1 = folded[0][0].astype(jnp.bfloat16)                         # [F, 128]
    wmid = jnp.stack([pad2(folded[i][0]) for i in range(1, 5)]
                     ).astype(jnp.bfloat16)                        # [4, 128, 128]
    bmid = jnp.stack([pad1(folded[i][1]) for i in range(0, 5)])    # [5, 128] f32
    w6 = folded[5][0].astype(jnp.bfloat16)                         # [128, F]
    b6 = folded[5][1].reshape(1, -1)                               # [1, F] f32
    return (w1, wmid, bmid, w6, b6)


# --------------------------------------------------------------------------
# References
# --------------------------------------------------------------------------
def reference_fused(x, fused_params, bf16_epilogue):
    """Plain-JAX reference using the exact same fused bf16 math as the kernel."""
    w1, wmid, bmid, w6, b6 = fused_params
    b_mid = bmid.astype(jnp.bfloat16) if bf16_epilogue else bmid

    def hidden(h, w, b):
        acc = jnp.dot(h, w, preferred_element_type=jnp.float32)
        if bf16_epilogue:
            return jnp.maximum(acc.astype(jnp.bfloat16) + b, 0)
        return jnp.maximum(acc + b, 0.0).astype(jnp.bfloat16)

    h = x.astype(jnp.bfloat16)
    h = hidden(h, w1, b_mid[0:1])
    for i in range(4):
        h = hidden(h, wmid[i], b_mid[i + 1:i + 2])
    y = jnp.dot(h, w6, preferred_element_type=jnp.float32) + b6
    return y.astype(jnp.bfloat16)


def reference_f32(x, raw, eps=1e-5):
    """Full-precision reference with the original (unfolded) module semantics."""
    h = x.astype(jnp.float32)
    for layer in raw:
        h = h @ layer["w"] + layer["b"]
        if "gamma" in layer:
            h = (h - layer["mean"]) / jnp.sqrt(layer["var"] + eps)
            h = h * layer["gamma"] + layer["beta"]
            h = jnp.maximum(h, 0.0)              # Dropout identity in eval
    return h


# --------------------------------------------------------------------------
if __name__ == "__main__":
    key = jax.random.PRNGKey(0)
    B, F = 8, 16                                   # small batch, input_size=16
    kx, kp = jax.random.split(key)
    x = jax.random.normal(kx, (B, F), jnp.float32)

    raw = init_raw_params(kp, F)
    fused = prepare_params(raw)
    bf16_ep = _default_bf16_epilogue()

    out = flight_prediction_mlp(x, fused, bf16_epilogue=bf16_ep)
    out = jax.block_until_ready(out)
    assert out.shape == (B, F)
    assert out.dtype == jnp.bfloat16

    out_f32 = out.astype(jnp.float32)
    ref_b = reference_fused(x, fused, bf16_ep).astype(jnp.float32)
    ref_f = reference_f32(x, raw)
    assert jnp.allclose(out_f32, ref_b, atol=3e-2, rtol=3e-2), \
        "mismatch vs fused bf16 reference"
    assert jnp.allclose(out_f32, ref_f, atol=2e-1, rtol=2e-1), \
        "mismatch vs full-precision module reference"

    print("KERNEL_OK")
</pallas_src>

<mosaic_0001>
module attributes {stable_mosaic.version = 11 : i64} {
  func.func @mlp_kernel(%arg0: i32, %arg1: memref<8x16xf32, #tpu.memory_space<vmem>>, %arg2: memref<16x128xbf16, #tpu.memory_space<vmem>>, %arg3: memref<4x128x128xbf16, #tpu.memory_space<vmem>>, %arg4: memref<5x128xf32, #tpu.memory_space<vmem>>, %arg5: memref<128x16xbf16, #tpu.memory_space<vmem>>, %arg6: memref<1x16xf32, #tpu.memory_space<vmem>>, %arg7: memref<8x16xbf16, #tpu.memory_space<vmem>>) attributes {dimension_semantics = [#tpu.dimension_semantics<parallel>], iteration_bounds = array<i64: 1>, scalar_prefetch = 0 : i64, scratch_operands = 0 : i64, tpu.core_type = #tpu.core_type<tc>, window_params = [{transform_indices = @transform_0, window_bounds = array<i64: 8, 16>}, {pipeline_mode = #tpu.pipeline_mode<synchronous>, transform_indices = @transform_1, window_bounds = array<i64: 16, 128>}, {pipeline_mode = #tpu.pipeline_mode<synchronous>, transform_indices = @transform_2, window_bounds = array<i64: 4, 128, 128>}, {pipeline_mode = #tpu.pipeline_mode<synchronous>, transform_indices = @transform_3, window_bounds = array<i64: 5, 128>}, {pipeline_mode = #tpu.pipeline_mode<synchronous>, transform_indices = @transform_4, window_bounds = array<i64: 128, 16>}, {pipeline_mode = #tpu.pipeline_mode<synchronous>, transform_indices = @transform_5, window_bounds = array<i64: 1, 16>}, {transform_indices = @transform_6, window_bounds = array<i64: 8, 16>}]} {
    %c0 = arith.constant 0 : index
    %c0_0 = arith.constant 0 : index
    %0 = vector.load %arg4[%c0, %c0_0] : memref<5x128xf32, #tpu.memory_space<vmem>>, vector<5x128xf32>
    %1 = arith.truncf %0 : vector<5x128xf32> to vector<5x128xbf16>
    %c0_1 = arith.constant 0 : index
    %c0_2 = arith.constant 0 : index
    %2 = vector.load %arg1[%c0_1, %c0_2] : memref<8x16xf32, #tpu.memory_space<vmem>>, vector<8x16xf32>
    %3 = arith.truncf %2 : vector<8x16xf32> to vector<8x16xbf16>
    %c0_3 = arith.constant 0 : index
    %c0_4 = arith.constant 0 : index
    %4 = vector.load %arg2[%c0_3, %c0_4] : memref<16x128xbf16, #tpu.memory_space<vmem>>, vector<16x128xbf16>
    %5 = vector.extract_strided_slice %1 {offsets = [0, 0], sizes = [1, 128], strides = [1, 1]} : vector<5x128xbf16> to vector<1x128xbf16>
    %cst = arith.constant dense<0.000000e+00> : vector<8x128xf32>
    %6 = tpu.matmul %3, %4, %cst {dimension_numbers = #tpu.dot_dimension_numbers<[1], [0], [0], [1], [0, 0, 1, 1], [], []>} : vector<8x16xbf16>, vector<16x128xbf16>, vector<8x128xf32> -> vector<8x128xf32>
    %7 = arith.truncf %6 : vector<8x128xf32> to vector<8x128xbf16>
    %8 = vector.broadcast %5 : vector<1x128xbf16> to vector<8x128xbf16>
    %9 = arith.addf %7, %8 : vector<8x128xbf16>
    %cst_5 = arith.constant 0.000000e+00 : bf16
    %10 = vector.broadcast %cst_5 : bf16 to vector<8x128xbf16>
    %11 = arith.maximumf %9, %10 : vector<8x128xbf16>
    %c0_6 = arith.constant 0 : index
    %c0_7 = arith.constant 0 : index
    %c0_8 = arith.constant 0 : index
    %12 = vector.load %arg3[%c0_6, %c0_7, %c0_8] : memref<4x128x128xbf16, #tpu.memory_space<vmem>>, vector<1x128x128xbf16>
    %13 = vector.shape_cast %12 : vector<1x128x128xbf16> to vector<128x128xbf16>
    %14 = vector.extract_strided_slice %1 {offsets = [1, 0], sizes = [1, 128], strides = [1, 1]} : vector<5x128xbf16> to vector<1x128xbf16>
    %cst_9 = arith.constant dense<0.000000e+00> : vector<8x128xf32>
    %15 = tpu.matmul %11, %13, %cst_9 {dimension_numbers = #tpu.dot_dimension_numbers<[1], [0], [0], [1], [0, 0, 1, 1], [], []>} : vector<8x128xbf16>, vector<128x128xbf16>, vector<8x128xf32> -> vector<8x128xf32>
    %16 = arith.truncf %15 : vector<8x128xf32> to vector<8x128xbf16>
    %17 = vector.broadcast %14 : vector<1x128xbf16> to vector<8x128xbf16>
    %18 = arith.addf %16, %17 : vector<8x128xbf16>
    %cst_10 = arith.constant 0.000000e+00 : bf16
    %19 = vector.broadcast %cst_10 : bf16 to vector<8x128xbf16>
    %20 = arith.maximumf %18, %19 : vector<8x128xbf16>
    %c1 = arith.constant 1 : index
    %c0_11 = arith.constant 0 : index
    %c0_12 = arith.constant 0 : index
    %21 = vector.load %arg3[%c1, %c0_11, %c0_12] : memref<4x128x128xbf16, #tpu.memory_space<vmem>>, vector<1x128x128xbf16>
    %22 = vector.shape_cast %21 : vector<1x128x128xbf16> to vector<128x128xbf16>
    %23 = vector.extract_strided_slice %1 {offsets = [2, 0], sizes = [1, 128], strides = [1, 1]} : vector<5x128xbf16> to vector<1x128xbf16>
    %cst_13 = arith.constant dense<0.000000e+00> : vector<8x128xf32>
    %24 = tpu.matmul %20, %22, %cst_13 {dimension_numbers = #tpu.dot_dimension_numbers<[1], [0], [0], [1], [0, 0, 1, 1], [], []>} : vector<8x128xbf16>, vector<128x128xbf16>, vector<8x128xf32> -> vector<8x128xf32>
    %25 = arith.truncf %24 : vector<8x128xf32> to vector<8x128xbf16>
    %26 = vector.broadcast %23 : vector<1x128xbf16> to vector<8x128xbf16>
    %27 = arith.addf %25, %26 : vector<8x128xbf16>
    %cst_14 = arith.constant 0.000000e+00 : bf16
    %28 = vector.broadcast %cst_14 : bf16 to vector<8x128xbf16>
    %29 = arith.maximumf %27, %28 : vector<8x128xbf16>
    %c2 = arith.constant 2 : index
    %c0_15 = arith.constant 0 : index
    %c0_16 = arith.constant 0 : index
    %30 = vector.load %arg3[%c2, %c0_15, %c0_16] : memref<4x128x128xbf16, #tpu.memory_space<vmem>>, vector<1x128x128xbf16>
    %31 = vector.shape_cast %30 : vector<1x128x128xbf16> to vector<128x128xbf16>
    %32 = vector.extract_strided_slice %1 {offsets = [3, 0], sizes = [1, 128], strides = [1, 1]} : vector<5x128xbf16> to vector<1x128xbf16>
    %cst_17 = arith.constant dense<0.000000e+00> : vector<8x128xf32>
    %33 = tpu.matmul %29, %31, %cst_17 {dimension_numbers = #tpu.dot_dimension_numbers<[1], [0], [0], [1], [0, 0, 1, 1], [], []>} : vector<8x128xbf16>, vector<128x128xbf16>, vector<8x128xf32> -> vector<8x128xf32>
    %34 = arith.truncf %33 : vector<8x128xf32> to vector<8x128xbf16>
    %35 = vector.broadcast %32 : vector<1x128xbf16> to vector<8x128xbf16>
    %36 = arith.addf %34, %35 : vector<8x128xbf16>
    %cst_18 = arith.constant 0.000000e+00 : bf16
    %37 = vector.broadcast %cst_18 : bf16 to vector<8x128xbf16>
    %38 = arith.maximumf %36, %37 : vector<8x128xbf16>
    %c3 = arith.constant 3 : index
    %c0_19 = arith.constant 0 : index
    %c0_20 = arith.constant 0 : index
    %39 = vector.load %arg3[%c3, %c0_19, %c0_20] : memref<4x128x128xbf16, #tpu.memory_space<vmem>>, vector<1x128x128xbf16>
    %40 = vector.shape_cast %39 : vector<1x128x128xbf16> to vector<128x128xbf16>
    %41 = vector.extract_strided_slice %1 {offsets = [4, 0], sizes = [1, 128], strides = [1, 1]} : vector<5x128xbf16> to vector<1x128xbf16>
    %cst_21 = arith.constant dense<0.000000e+00> : vector<8x128xf32>
    %42 = tpu.matmul %38, %40, %cst_21 {dimension_numbers = #tpu.dot_dimension_numbers<[1], [0], [0], [1], [0, 0, 1, 1], [], []>} : vector<8x128xbf16>, vector<128x128xbf16>, vector<8x128xf32> -> vector<8x128xf32>
    %43 = arith.truncf %42 : vector<8x128xf32> to vector<8x128xbf16>
    %44 = vector.broadcast %41 : vector<1x128xbf16> to vector<8x128xbf16>
    %45 = arith.addf %43, %44 : vector<8x128xbf16>
    %cst_22 = arith.constant 0.000000e+00 : bf16
    %46 = vector.broadcast %cst_22 : bf16 to vector<8x128xbf16>
    %47 = arith.maximumf %45, %46 : vector<8x128xbf16>
    %c0_23 = arith.constant 0 : index
    %c0_24 = arith.constant 0 : index
    %48 = vector.load %arg5[%c0_23, %c0_24] : memref<128x16xbf16, #tpu.memory_space<vmem>>, vector<128x16xbf16>
    %cst_25 = arith.constant dense<0.000000e+00> : vector<8x16xf32>
    %49 = tpu.matmul %47, %48, %cst_25 {dimension_numbers = #tpu.dot_dimension_numbers<[1], [0], [0], [1], [0, 0, 1, 1], [], []>} : vector<8x128xbf16>, vector<128x16xbf16>, vector<8x16xf32> -> vector<8x16xf32>
    %c0_26 = arith.constant 0 : index
    %c0_27 = arith.constant 0 : index
    %50 = vector.load %arg6[%c0_26, %c0_27] : memref<1x16xf32, #tpu.memory_space<vmem>>, vector<1x16xf32>
    %51 = vector.broadcast %50 : vector<1x16xf32> to vector<8x16xf32>
    %52 = arith.addf %49, %51 : vector<8x16xf32>
    %53 = arith.truncf %52 : vector<8x16xf32> to vector<8x16xbf16>
    %c0_28 = arith.constant 0 : index
    %c0_29 = arith.constant 0 : index
    %54 = vector.load %arg7[%c0_28, %c0_29] : memref<8x16xbf16, #tpu.memory_space<vmem>>, vector<8x16xbf16>
    tpu.vector_store %arg7[%c0_28, %c0_29], %53 {strides = array<i32>} : memref<8x16xbf16, #tpu.memory_space<vmem>>, vector<8x16xbf16>,
    return
  }
  func.func @transform_0(%arg0: i32) -> (i32, i32) {
    %c0_i32 = arith.constant 0 : i32
    %c0_i32_0 = arith.constant 0 : i32
    return %arg0, %c0_i32 : i32, i32
  }
  func.func @transform_1(%arg0: i32) -> (i32, i32) {
    %c0_i32 = arith.constant 0 : i32
    %c0_i32_0 = arith.constant 0 : i32
    %c0_i32_1 = arith.constant 0 : i32
    return %c0_i32, %c0_i32_0 : i32, i32
  }
  func.func @transform_2(%arg0: i32) -> (i32, i32, i32) {
    %c0_i32 = arith.constant 0 : i32
    %c0_i32_0 = arith.constant 0 : i32
    %c0_i32_1 = arith.constant 0 : i32
    %c0_i32_2 = arith.constant 0 : i32
    return %c0_i32, %c0_i32_0, %c0_i32_1 : i32, i32, i32
  }
  func.func @transform_3(%arg0: i32) -> (i32, i32) {
    %c0_i32 = arith.constant 0 : i32
    %c0_i32_0 = arith.constant 0 : i32
    %c0_i32_1 = arith.constant 0 : i32
    return %c0_i32, %c0_i32_0 : i32, i32
  }
  func.func @transform_4(%arg0: i32) -> (i32, i32) {
    %c0_i32 = arith.constant 0 : i32
    %c0_i32_0 = arith.constant 0 : i32
    %c0_i32_1 = arith.constant 0 : i32
    return %c0_i32, %c0_i32_0 : i32, i32
  }
  func.func @transform_5(%arg0: i32) -> (i32, i32) {
    %c0_i32 = arith.constant 0 : i32
    %c0_i32_0 = arith.constant 0 : i32
    %c0_i32_1 = arith.constant 0 : i32
    return %c0_i32, %c0_i32_0 : i32, i32
  }
  func.func @transform_6(%arg0: i32) -> (i32, i32) {
    %c0_i32 = arith.constant 0 : i32
    %c0_i32_0 = arith.constant 0 : i32
    return %arg0, %c0_i32 : i32, i32
  }
}

</mosaic_0001>

<llo_original>
// kernel: tpu_custom_call.1
$region0: #{tpu_custom_call.1}
  #allocation0 [shape = 'u32[]', space=smem, size = 0x4, offset = 0x4, fixed_abs, tag = 'smem constant byte address 0x4 - core index']
  #allocation1 [shape = 'u32[144,128]{1,0:T(1,128)}', space=vmem, size = 0x12000, scoped, tag = 'internal scratch']
  %s0 = inlined_call_operand.vmem [shape: f32[8,16], index: 0, kind: input, shape index: {}]
  %s1 = inlined_call_operand.vmem [shape: bf16[16,128], index: 1, kind: input, shape index: {}]
  %s2 = inlined_call_operand.hbm [shape: bf16[4,128,128], index: 2, kind: input, shape index: {}]
  %s3 = inlined_call_operand.vmem [shape: f32[5,128], index: 3, kind: input, shape index: {}]
  %s4 = inlined_call_operand.vmem [shape: bf16[128,16], index: 4, kind: input, shape index: {}]
  %s5 = inlined_call_operand.vmem [shape: f32[1,16], index: 5, kind: input, shape index: {}]
  %s6 = inlined_call_operand.hbm [shape: bf16[8,16], index: 6, kind: output, shape index: {}]
  %s7 = sld [smem:[#allocation0]]
  $region38: #{tpu_custom_call.1} parent=0
    _
  %s9 = ssub.s32 1, %s7
  %s10 = scalar_select 0, %s9, %s7
  $region1: #{tpu_custom_call.1} parent=0
    #allocation2 [shape = 'u8[131072]{0}', space=vmem, size = 0x20000, scoped, tag = 'input window, operand 2, single buffered']
    #allocation3 [shape = 's32[1]{0}', space=sflag, size = 0x4, scoped, tag = 'scoped memory for tpu_custom_call.1']
    #allocation4 [shape = 's32[1]{0}', space=sflag, size = 0x4, scoped, tag = 'scoped memory for tpu_custom_call.1']
    #allocation5 [shape = 'u8[2048]{0}', space=vmem, size = 0x800, scoped, tag = 'output window, operand 0, single buffered']
    %11 = vsyncpa [#allocation3], 0
    %12 = vsyncpa [#allocation4], 0
    // Predicated region
    $region2: #{tpu_custom_call.1} parent=1 // pred_check
      _
    $region3: #{tpu_custom_call.1} parent=1 // pred_check_branch
      %14 = sbr.rel (0) target = $region5
    $region4: #{tpu_custom_call.1} parent=1 // pred_region
      _
    $region5: #{tpu_custom_call.1} parent=1 // pred_fallthru
      _
    // Predicated region
    $region6: #{tpu_custom_call.1} parent=1 // pred_check
      _
    $region7: #{tpu_custom_call.1} parent=1 // pred_check_branch
      %16 = sbr.rel (0) target = $region9
    $region8: #{tpu_custom_call.1} parent=1 // pred_region
      _
    $region9: #{tpu_custom_call.1} parent=1 // pred_fallthru
      _
    // Predicated region
    $region10: #{tpu_custom_call.1} parent=1 // pred_check
      _
    $region11: #{tpu_custom_call.1} parent=1 // pred_check_branch
      %18 = sbr.rel (0) target = $region13
    $region12: #{tpu_custom_call.1} parent=1 // pred_region
      %s20 = ssub.s32 4096, 4096
      %21 = vsyncadd [#allocation3], %s20
      %s22 = sshll.u32 [#allocation2], 4
      %s23 = int_to_ptr.vmem [resolvable:$true] %s22
      %28 = dma.hbm_to_vmem [thread:$0]  %s2, 4096, %s23, [#allocation3], 64, 64, 4
    $region13: #{tpu_custom_call.1} parent=1 // pred_fallthru
      _
    // Predicated region
    $region14: #{tpu_custom_call.1} parent=1 // pred_check
      _
    $region15: #{tpu_custom_call.1} parent=1 // pred_check_branch
      %30 = sbr.rel (0) target = $region17
    $region16: #{tpu_custom_call.1} parent=1 // pred_region
      _
    $region17: #{tpu_custom_call.1} parent=1 // pred_fallthru
      _
    // Predicated region
    $region18: #{tpu_custom_call.1} parent=1 // pred_check
      _
    $region19: #{tpu_custom_call.1} parent=1 // pred_check_branch
      %32 = sbr.rel (0) target = $region21
    $region20: #{tpu_custom_call.1} parent=1 // pred_region
      _
    $region21: #{tpu_custom_call.1} parent=1 // pred_fallthru
      _
    // Predicated region
    $region22: #{tpu_custom_call.1} parent=1 // pred_check
      _
    $region23: #{tpu_custom_call.1} parent=1 // pred_check_branch
      %34 = sbr.rel (0) target = $region25
    $region24: #{tpu_custom_call.1} parent=1 // pred_region
      _
    $region25: #{tpu_custom_call.1} parent=1 // pred_fallthru
      _
    // Predicated region
    $region26: #{tpu_custom_call.1} parent=1 // pred_check
      _
    $region27: #{tpu_custom_call.1} parent=1 // pred_check_branch
      %36 = sbr.rel (0) target = $region29
    $region28: #{tpu_custom_call.1} parent=1 // pred_region
      %37 = dma.done [#allocation3], 4096
    $region29: #{tpu_custom_call.1} parent=1 // pred_fallthru
      _
    %v39 = vld [vmem:[%s3] sm:$0x1f]
    %v40 = vpack.c.bf16 %v39, %v39
    %v41 = vld [vmem:[%s0] sm:$0xff]
    %v42 = vpack.c.bf16 %v41, %v41
    %v43 = vld [vmem:[%s1] sm:$0xf]
    %v44 = vld [vmem:[%s1 + $0x4] sm:$0xf]
    %v47 = vunpack.c.l.b16 %v43
    %v48 = vunpack.c.l.b16 %v44
    %v49 = vpack.c.b16 %v48, %v47
    %vm51 = vcmask 130048
    %v53 = vsel %vm51, %v42, 0
    %55 = vmatprep.subr.bf16.mxu0 0
    %56 = vmatpush1.bf16.msra.mxu0 0
    %57 = vmatprep.subr.bf16.mxu0 0
    %58 = vmatpush1.bf16.msra.mxu0 0
    %59 = vmatprep.subr.bf16.mxu0 0
    %60 = vmatpush1.bf16.msra.mxu0 0
    %61 = vmatprep.subr.bf16.mxu0 0
    %62 = vmatpush1.bf16.msra.mxu0 0
    %63 = vmatprep.subr.bf16.mxu0 0
    %64 = vmatpush1.bf16.msra.mxu0 0
    %65 = vmatprep.subr.bf16.mxu0 0
    %66 = vmatpush1.bf16.msra.mxu0 0
    %67 = vmatprep.subr.bf16.mxu0 0
    %68 = vmatpush1.bf16.msra.mxu0 0
    %69 = vmatprep.subr.bf16.mxu0 0
    %70 = vmatpush1.bf16.msra.mxu0 %v49
    %71 = vmatprep.subr.bf16.mxu0 0
    %72 = vmatpush2.bf16.msra.mxu0 0
    %73 = vmatprep.subr.bf16.mxu0 0
    %74 = vmatpush2.bf16.msra.mxu0 0
    %75 = vmatprep.subr.bf16.mxu0 0
    %76 = vmatpush2.bf16.msra.mxu0 0
    %77 = vmatprep.subr.bf16.mxu0 0
    %78 = vmatpush2.bf16.msra.mxu0 0
    %79 = vmatprep.subr.bf16.mxu0 0
    %80 = vmatpush2.bf16.msra.mxu0 0
    %81 = vmatprep.subr.bf16.mxu0 0
    %82 = vmatpush2.bf16.msra.mxu0 0
    %83 = vmatprep.subr.bf16.mxu0 0
    %84 = vmatpush2.bf16.msra.mxu0 0
    %85 = vmatprep.subr.bf16.mxu0 0
    %86 = vmatpush2.bf16.msra.mxu0 0
    %87 = vmatprep.mubr.bf16.mxu0 0
    %88 = vmatmul.mubr.bf16.gmra.mxu0 %v53
    %v89 = vpop.f32.mrf.mxu0
    %v90 = vadd.f32 0.0, %v89
    %v91 = vpop.f32.mrf.mxu0
    %v92 = vpop.f32.mrf.mxu0
    %v93 = vpop.f32.mrf.mxu0
    %94 = vdwg.mxu0
    %v95 = vpack.c.bf16 %v90, %v90
    %v97 = vpack.i.b16 %v40, %v40
    %v99 = vlaneseq
    %v100 = vshrl.u32 %v99, 7
    %v101 = vsub.s32 0, %v100
    %v102 = vrot.slane %v97, %v101
    %v103 = vadd.bf16 %v95, %v102
    %v104 = vmax.bf16 %v103, 0
    %v105 = vld [vmem:[#allocation2] sm:$0xf]
    %v106 = vld [vmem:[#allocation2 + $0x4] sm:$0xf]
    %v107 = vld [vmem:[#allocation2 + $0x8] sm:$0xf]
    %v108 = vld [vmem:[#allocation2 + $0xc] sm:$0xf]
    %v109 = vld [vmem:[#allocation2 + $0x10] sm:$0xf]
    %v110 = vld [vmem:[#allocation2 + $0x14] sm:$0xf]
    %v111 = vld [vmem:[#allocation2 + $0x18] sm:$0xf]
    %v112 = vld [vmem:[#allocation2 + $0x1c] sm:$0xf]
    %v113 = vld [vmem:[#allocation2 + $0x20] sm:$0xf]
    %v114 = vld [vmem:[#allocation2 + $0x24] sm:$0xf]
    %v115 = vld [vmem:[#allocation2 + $0x28] sm:$0xf]
    %v116 = vld [vmem:[#allocation2 + $0x2c] sm:$0xf]
    %v117 = vld [vmem:[#allocation2 + $0x30] sm:$0xf]
    %v118 = vld [vmem:[#allocation2 + $0x34] sm:$0xf]
    %v119 = vld [vmem:[#allocation2 + $0x38] sm:$0xf]
    %v120 = vld [vmem:[#allocation2 + $0x3c] sm:$0xf]
    %v137 = vunpack.c.l.b16 %v105
    %v138 = vunpack.c.l.b16 %v106
    %v139 = vunpack.c.l.b16 %v107
    %v140 = vunpack.c.l.b16 %v108
    %v141 = vunpack.c.l.b16 %v109
    %v142 = vunpack.c.l.b16 %v110
    %v143 = vunpack.c.l.b16 %v111
    %v144 = vunpack.c.l.b16 %v112
    %v145 = vunpack.c.l.b16 %v113
    %v146 = vunpack.c.l.b16 %v114
    %v147 = vunpack.c.l.b16 %v115
    %v148 = vunpack.c.l.b16 %v116
    %v149 = vunpack.c.l.b16 %v117
    %v150 = vunpack.c.l.b16 %v118
    %v151 = vunpack.c.l.b16 %v119
    %v152 = vunpack.c.l.b16 %v120
    %v153 = vpack.c.b16 %v138, %v137
    %v154 = vpack.c.b16 %v140, %v139
    %v155 = vpack.c.b16 %v142, %v141
    %v156 = vpack.c.b16 %v144, %v143
    %v157 = vpack.c.b16 %v146, %v145
    %v158 = vpack.c.b16 %v148, %v147
    %v159 = vpack.c.b16 %v150, %v149
    %v160 = vpack.c.b16 %v152, %v151
    %169 = vmatprep.subr.bf16.mxu0 0
    %170 = vmatpush1.bf16.msra.mxu0 %v160
    %171 = vmatprep.subr.bf16.mxu0 0
    %172 = vmatpush1.bf16.msra.mxu0 %v159
    %173 = vmatprep.subr.bf16.mxu0 0
    %174 = vmatpush1.bf16.msra.mxu0 %v158
    %175 = vmatprep.subr.bf16.mxu0 0
    %176 = vmatpush1.bf16.msra.mxu0 %v157
    %177 = vmatprep.subr.bf16.mxu0 0
    %178 = vmatpush1.bf16.msra.mxu0 %v156
    %179 = vmatprep.subr.bf16.mxu0 0
    %180 = vmatpush1.bf16.msra.mxu0 %v155
    %181 = vmatprep.subr.bf16.mxu0 0
    %182 = vmatpush1.bf16.msra.mxu0 %v154
    %183 = vmatprep.subr.bf16.mxu0 0
    %184 = vmatpush1.bf16.msra.mxu0 %v153
    %185 = vmatprep.subr.bf16.mxu0 0
    %186 = vmatpush2.bf16.msra.mxu0 0
    %187 = vmatprep.subr.bf16.mxu0 0
    %188 = vmatpush2.bf16.msra.mxu0 0
    %189 = vmatprep.subr.bf16.mxu0 0
    %190 = vmatpush2.bf16.msra.mxu0 0
    %191 = vmatprep.subr.bf16.mxu0 0
    %192 = vmatpush2.bf16.msra.mxu0 0
    %193 = vmatprep.subr.bf16.mxu0 0
    %194 = vmatpush2.bf16.msra.mxu0 0
    %195 = vmatprep.subr.bf16.mxu0 0
    %196 = vmatpush2.bf16.msra.mxu0 0
    %197 = vmatprep.subr.bf16.mxu0 0
    %198 = vmatpush2.bf16.msra.mxu0 0
    %199 = vmatprep.subr.bf16.mxu0 0
    %200 = vmatpush2.bf16.msra.mxu0 0
    %201 = vmatprep.mubr.bf16.mxu0 0
    %202 = vmatmul.mubr.bf16.gmra.mxu0 %v104
    %v203 = vpop.f32.mrf.mxu0
    %v204 = vadd.f32 0.0, %v203
    %v205 = vpop.f32.mrf.mxu0
    %v206 = vpop.f32.mrf.mxu0
    %v207 = vpop.f32.mrf.mxu0
    %208 = vdwg.mxu0
    %v209 = vpack.c.bf16 %v204, %v204
    %v210 = vshrl.u32 %v40, 16
    %v211 = vpack.i.b16 %v210, %v210
    %v213 = vlaneseq
    %v214 = vshrl.u32 %v213, 7
    %v215 = vsub.s32 0, %v214
    %v216 = vrot.slane %v211, %v215
    %v217 = vadd.bf16 %v209, %v216
    %v218 = vmax.bf16 %v217, 0
    %s219 = scalar_lea.vmem [#allocation2], 64
    %v220 = vld [vmem:[%s219] sm:$0xf]
    %v221 = vld [vmem:[%s219 + $0x4] sm:$0xf]
    %v222 = vld [vmem:[%s219 + $0x8] sm:$0xf]
    %v223 = vld [vmem:[%s219 + $0xc] sm:$0xf]
    %v224 = vld [vmem:[%s219 + $0x10] sm:$0xf]
    %v225 = vld [vmem:[%s219 + $0x14] sm:$0xf]
    %v226 = vld [vmem:[%s219 + $0x18] sm:$0xf]
    %v227 = vld [vmem:[%s219 + $0x1c] sm:$0xf]
    %v228 = vld [vmem:[%s219 + $0x20] sm:$0xf]
    %v229 = vld [vmem:[%s219 + $0x24] sm:$0xf]
    %v230 = vld [vmem:[%s219 + $0x28] sm:$0xf]
    %v231 = vld [vmem:[%s219 + $0x2c] sm:$0xf]
    %v232 = vld [vmem:[%s219 + $0x30] sm:$0xf]
    %v233 = vld [vmem:[%s219 + $0x34] sm:$0xf]
    %v234 = vld [vmem:[%s219 + $0x38] sm:$0xf]
    %v235 = vld [vmem:[%s219 + $0x3c] sm:$0xf]
    %v252 = vunpack.c.l.b16 %v220
    %v253 = vunpack.c.l.b16 %v221
    %v254 = vunpack.c.l.b16 %v222
    %v255 = vunpack.c.l.b16 %v223
    %v256 = vunpack.c.l.b16 %v224
    %v257 = vunpack.c.l.b16 %v225
    %v258 = vunpack.c.l.b16 %v226
    %v259 = vunpack.c.l.b16 %v227
    %v260 = vunpack.c.l.b16 %v228
    %v261 = vunpack.c.l.b16 %v229
    %v262 = vunpack.c.l.b16 %v230
    %v263 = vunpack.c.l.b16 %v231
    %v264 = vunpack.c.l.b16 %v232
    %v265 = vunpack.c.l.b16 %v233
    %v266 = vunpack.c.l.b16 %v234
    %v267 = vunpack.c.l.b16 %v235
    %v268 = vpack.c.b16 %v253, %v252
    %v269 = vpack.c.b16 %v255, %v254
    %v270 = vpack.c.b16 %v257, %v256
    %v271 = vpack.c.b16 %v259, %v258
    %v272 = vpack.c.b16 %v261, %v260
    %v273 = vpack.c.b16 %v263, %v262
    %v274 = vpack.c.b16 %v265, %v264
    %v275 = vpack.c.b16 %v267, %v266
    %284 = vmatprep.subr.bf16.mxu0 0
    %285 = vmatpush1.bf16.msra.mxu0 %v275
    %286 = vmatprep.subr.bf16.mxu0 0
    %287 = vmatpush1.bf16.msra.mxu0 %v274
    %288 = vmatprep.subr.bf16.mxu0 0
    %289 = vmatpush1.bf16.msra.mxu0 %v273
    %290 = vmatprep.subr.bf16.mxu0 0
    %291 = vmatpush1.bf16.msra.mxu0 %v272
    %292 = vmatprep.subr.bf16.mxu0 0
    %293 = vmatpush1.bf16.msra.mxu0 %v271
    %294 = vmatprep.subr.bf16.mxu0 0
    %295 = vmatpush1.bf16.msra.mxu0 %v270
    %296 = vmatprep.subr.bf16.mxu0 0
    %297 = vmatpush1.bf16.msra.mxu0 %v269
    %298 = vmatprep.subr.bf16.mxu0 0
    %299 = vmatpush1.bf16.msra.mxu0 %v268
    %300 = vmatprep.subr.bf16.mxu0 0
    %301 = vmatpush2.bf16.msra.mxu0 0
    %302 = vmatprep.subr.bf16.mxu0 0
    %303 = vmatpush2.bf16.msra.mxu0 0
    %304 = vmatprep.subr.bf16.mxu0 0
    %305 = vmatpush2.bf16.msra.mxu0 0
    %306 = vmatprep.subr.bf16.mxu0 0
    %307 = vmatpush2.bf16.msra.mxu0 0
    %308 = vmatprep.subr.bf16.mxu0 0
    %309 = vmatpush2.bf16.msra.mxu0 0
    %310 = vmatprep.subr.bf16.mxu0 0
    %311 = vmatpush2.bf16.msra.mxu0 0
    %312 = vmatprep.subr.bf16.mxu0 0
    %313 = vmatpush2.bf16.msra.mxu0 0
    %314 = vmatprep.subr.bf16.mxu0 0
    %315 = vmatpush2.bf16.msra.mxu0 0
    %316 = vmatprep.mubr.bf16.mxu0 0
    %317 = vmatmul.mubr.bf16.gmra.mxu0 %v218
    %v318 = vpop.f32.mrf.mxu0
    %v319 = vadd.f32 0.0, %v318
    %v320 = vpop.f32.mrf.mxu0
    %v321 = vpop.f32.mrf.mxu0
    %v322 = vpop.f32.mrf.mxu0
    %323 = vdwg.mxu0
    %v324 = vpack.c.bf16 %v319, %v319
    %v325 = vlaneseq
    %v326 = vshrl.u32 %v325, 7
    %v327 = vsub.s32 1, %v326
    %v328 = vrot.slane %v97, %v327
    %v329 = vadd.bf16 %v324, %v328
    %v330 = vmax.bf16 %v329, 0
    %s331 = scalar_lea.vmem [#allocation2], 128
    %v332 = vld [vmem:[%s331] sm:$0xf]
    %v333 = vld [vmem:[%s331 + $0x4] sm:$0xf]
    %v334 = vld [vmem:[%s331 + $0x8] sm:$0xf]
    %v335 = vld [vmem:[%s331 + $0xc] sm:$0xf]
    %v336 = vld [vmem:[%s331 + $0x10] sm:$0xf]
    %v337 = vld [vmem:[%s331 + $0x14] sm:$0xf]
    %v338 = vld [vmem:[%s331 + $0x18] sm:$0xf]
    %v339 = vld [vmem:[%s331 + $0x1c] sm:$0xf]
    %v340 = vld [vmem:[%s331 + $0x20] sm:$0xf]
    %v341 = vld [vmem:[%s331 + $0x24] sm:$0xf]
    %v342 = vld [vmem:[%s331 + $0x28] sm:$0xf]
    %v343 = vld [vmem:[%s331 + $0x2c] sm:$0xf]
    %v344 = vld [vmem:[%s331 + $0x30] sm:$0xf]
    %v345 = vld [vmem:[%s331 + $0x34] sm:$0xf]
    %v346 = vld [vmem:[%s331 + $0x38] sm:$0xf]
    %v347 = vld [vmem:[%s331 + $0x3c] sm:$0xf]
    %v364 = vunpack.c.l.b16 %v332
    %v365 = vunpack.c.l.b16 %v333
    %v366 = vunpack.c.l.b16 %v334
    %v367 = vunpack.c.l.b16 %v335
    %v368 = vunpack.c.l.b16 %v336
    %v369 = vunpack.c.l.b16 %v337
    %v370 = vunpack.c.l.b16 %v338
    %v371 = vunpack.c.l.b16 %v339
    %v372 = vunpack.c.l.b16 %v340
    %v373 = vunpack.c.l.b16 %v341
    %v374 = vunpack.c.l.b16 %v342
    %v375 = vunpack.c.l.b16 %v343
    %v376 = vunpack.c.l.b16 %v344
    %v377 = vunpack.c.l.b16 %v345
    %v378 = vunpack.c.l.b16 %v346
    %v379 = vunpack.c.l.b16 %v347
    %v380 = vpack.c.b16 %v365, %v364
    %v381 = vpack.c.b16 %v367, %v366
    %v382 = vpack.c.b16 %v369, %v368
    %v383 = vpack.c.b16 %v371, %v370
    %v384 = vpack.c.b16 %v373, %v372
    %v385 = vpack.c.b16 %v375, %v374
    %v386 = vpack.c.b16 %v377, %v376
    %v387 = vpack.c.b16 %v379, %v378
    %396 = vmatprep.subr.bf16.mxu0 0
    %397 = vmatpush1.bf16.msra.mxu0 %v387
    %398 = vmatprep.subr.bf16.mxu0 0
    %399 = vmatpush1.bf16.msra.mxu0 %v386
    %400 = vmatprep.subr.bf16.mxu0 0
    %401 = vmatpush1.bf16.msra.mxu0 %v385
    %402 = vmatprep.subr.bf16.mxu0 0
    %403 = vmatpush1.bf16.msra.mxu0 %v384
    %404 = vmatprep.subr.bf16.mxu0 0
    %405 = vmatpush1.bf16.msra.mxu0 %v383
    %406 = vmatprep.subr.bf16.mxu0 0
    %407 = vmatpush1.bf16.msra.mxu0 %v382
    %408 = vmatprep.subr.bf16.mxu0 0
    %409 = vmatpush1.bf16.msra.mxu0 %v381
    %410 = vmatprep.subr.bf16.mxu0 0
    %411 = vmatpush1.bf16.msra.mxu0 %v380
    %412 = vmatprep.subr.bf16.mxu0 0
    %413 = vmatpush2.bf16.msra.mxu0 0
    %414 = vmatprep.subr.bf16.mxu0 0
    %415 = vmatpush2.bf16.msra.mxu0 0
    %416 = vmatprep.subr.bf16.mxu0 0
    %417 = vmatpush2.bf16.msra.mxu0 0
    %418 = vmatprep.subr.bf16.mxu0 0
    %419 = vmatpush2.bf16.msra.mxu0 0
    %420 = vmatprep.subr.bf16.mxu0 0
    %421 = vmatpush2.bf16.msra.mxu0 0
    %422 = vmatprep.subr.bf16.mxu0 0
    %423 = vmatpush2.bf16.msra.mxu0 0
    %424 = vmatprep.subr.bf16.mxu0 0
    %425 = vmatpush2.bf16.msra.mxu0 0
    %426 = vmatprep.subr.bf16.mxu0 0
    %427 = vmatpush2.bf16.msra.mxu0 0
    %428 = vmatprep.mubr.bf16.mxu0 0
    %429 = vmatmul.mubr.bf16.gmra.mxu0 %v330
    %v430 = vpop.f32.mrf.mxu0
    %v431 = vadd.f32 0.0, %v430
    %v432 = vpop.f32.mrf.mxu0
    %v433 = vpop.f32.mrf.mxu0
    %v434 = vpop.f32.mrf.mxu0
    %435 = vdwg.mxu0
    %v436 = vpack.c.bf16 %v431, %v431
    %v437 = vlaneseq
    %v438 = vshrl.u32 %v437, 7
    %v439 = vsub.s32 1, %v438
    %v440 = vrot.slane %v211, %v439
    %v441 = vadd.bf16 %v436, %v440
    %v442 = vmax.bf16 %v441, 0
    %s443 = scalar_lea.vmem [#allocation2], 192
    %v444 = vld [vmem:[%s443] sm:$0xf]
    %v445 = vld [vmem:[%s443 + $0x4] sm:$0xf]
    %v446 = vld [vmem:[%s443 + $0x8] sm:$0xf]
    %v447 = vld [vmem:[%s443 + $0xc] sm:$0xf]
    %v448 = vld [vmem:[%s443 + $0x10] sm:$0xf]
    %v449 = vld [vmem:[%s443 + $0x14] sm:$0xf]
    %v450 = vld [vmem:[%s443 + $0x18] sm:$0xf]
    %v451 = vld [vmem:[%s443 + $0x1c] sm:$0xf]
    %v452 = vld [vmem:[%s443 + $0x20] sm:$0xf]
    %v453 = vld [vmem:[%s443 + $0x24] sm:$0xf]
    %v454 = vld [vmem:[%s443 + $0x28] sm:$0xf]
    %v455 = vld [vmem:[%s443 + $0x2c] sm:$0xf]
    %v456 = vld [vmem:[%s443 + $0x30] sm:$0xf]
    %v457 = vld [vmem:[%s443 + $0x34] sm:$0xf]
    %v458 = vld [vmem:[%s443 + $0x38] sm:$0xf]
    %v459 = vld [vmem:[%s443 + $0x3c] sm:$0xf]
    %v476 = vunpack.c.l.b16 %v444
    %v477 = vunpack.c.l.b16 %v445
    %v478 = vunpack.c.l.b16 %v446
    %v479 = vunpack.c.l.b16 %v447
    %v480 = vunpack.c.l.b16 %v448
    %v481 = vunpack.c.l.b16 %v449
    %v482 = vunpack.c.l.b16 %v450
    %v483 = vunpack.c.l.b16 %v451
    %v484 = vunpack.c.l.b16 %v452
    %v485 = vunpack.c.l.b16 %v453
    %v486 = vunpack.c.l.b16 %v454
    %v487 = vunpack.c.l.b16 %v455
    %v488 = vunpack.c.l.b16 %v456
    %v489 = vunpack.c.l.b16 %v457
    %v490 = vunpack.c.l.b16 %v458
    %v491 = vunpack.c.l.b16 %v459
    %v492 = vpack.c.b16 %v477, %v476
    %v493 = vpack.c.b16 %v479, %v478
    %v494 = vpack.c.b16 %v481, %v480
    %v495 = vpack.c.b16 %v483, %v482
    %v496 = vpack.c.b16 %v485, %v484
    %v497 = vpack.c.b16 %v487, %v486
    %v498 = vpack.c.b16 %v489, %v488
    %v499 = vpack.c.b16 %v491, %v490
    %508 = vmatprep.subr.bf16.mxu0 0
    %509 = vmatpush1.bf16.msra.mxu0 %v499
    %510 = vmatprep.subr.bf16.mxu0 0
    %511 = vmatpush1.bf16.msra.mxu0 %v498
    %512 = vmatprep.subr.bf16.mxu0 0
    %513 = vmatpush1.bf16.msra.mxu0 %v497
    %514 = vmatprep.subr.bf16.mxu0 0
    %515 = vmatpush1.bf16.msra.mxu0 %v496
    %516 = vmatprep.subr.bf16.mxu0 0
    %517 = vmatpush1.bf16.msra.mxu0 %v495
    %518 = vmatprep.subr.bf16.mxu0 0
    %519 = vmatpush1.bf16.msra.mxu0 %v494
    %520 = vmatprep.subr.bf16.mxu0 0
    %521 = vmatpush1.bf16.msra.mxu0 %v493
    %522 = vmatprep.subr.bf16.mxu0 0
    %523 = vmatpush1.bf16.msra.mxu0 %v492
    %524 = vmatprep.subr.bf16.mxu0 0
    %525 = vmatpush2.bf16.msra.mxu0 0
    %526 = vmatprep.subr.bf16.mxu0 0
    %527 = vmatpush2.bf16.msra.mxu0 0
    %528 = vmatprep.subr.bf16.mxu0 0
    %529 = vmatpush2.bf16.msra.mxu0 0
    %530 = vmatprep.subr.bf16.mxu0 0
    %531 = vmatpush2.bf16.msra.mxu0 0
    %532 = vmatprep.subr.bf16.mxu0 0
    %533 = vmatpush2.bf16.msra.mxu0 0
    %534 = vmatprep.subr.bf16.mxu0 0
    %535 = vmatpush2.bf16.msra.mxu0 0
    %536 = vmatprep.subr.bf16.mxu0 0
    %537 = vmatpush2.bf16.msra.mxu0 0
    %538 = vmatprep.subr.bf16.mxu0 0
    %539 = vmatpush2.bf16.msra.mxu0 0
    %540 = vmatprep.mubr.bf16.mxu0 0
    %541 = vmatmul.mubr.bf16.gmra.mxu0 %v442
    %v542 = vpop.f32.mrf.mxu0
    %v543 = vadd.f32 0.0, %v542
    %v544 = vpop.f32.mrf.mxu0
    %v545 = vpop.f32.mrf.mxu0
    %v546 = vpop.f32.mrf.mxu0
    %547 = vdwg.mxu0
    %v548 = vpack.c.bf16 %v543, %v543
    %v549 = vlaneseq
    %v550 = vshrl.u32 %v549, 7
    %v551 = vsub.s32 2, %v550
    %v552 = vrot.slane %v97, %v551
    %v553 = vadd.bf16 %v548, %v552
    %v554 = vmax.bf16 %v553, 0
    %v555 = vld [vmem:[%s4] sm:$0xf]
    %v556 = vld [vmem:[%s4 + $0x4] sm:$0xf]
    %v557 = vld [vmem:[%s4 + $0x8] sm:$0xf]
    %v558 = vld [vmem:[%s4 + $0xc] sm:$0xf]
    %v559 = vld [vmem:[%s4 + $0x10] sm:$0xf]
    %v560 = vld [vmem:[%s4 + $0x14] sm:$0xf]
    %v561 = vld [vmem:[%s4 + $0x18] sm:$0xf]
    %v562 = vld [vmem:[%s4 + $0x1c] sm:$0xf]
    %v563 = vld [vmem:[%s4 + $0x20] sm:$0xf]
    %v564 = vld [vmem:[%s4 + $0x24] sm:$0xf]
    %v565 = vld [vmem:[%s4 + $0x28] sm:$0xf]
    %v566 = vld [vmem:[%s4 + $0x2c] sm:$0xf]
    %v567 = vld [vmem:[%s4 + $0x30] sm:$0xf]
    %v568 = vld [vmem:[%s4 + $0x34] sm:$0xf]
    %v569 = vld [vmem:[%s4 + $0x38] sm:$0xf]
    %v570 = vld [vmem:[%s4 + $0x3c] sm:$0xf]
    %v571 = vld [vmem:[%s5] sm:$0x1]
    %v573 = vlaneseq
    %v574 = vshrl.u32 %v573, 7
    %v575 = vsub.s32 0, %v574
    %v576 = vrot.slane %v571, %v575
    %v594 = vunpack.c.l.b16 %v555
    %v595 = vunpack.c.l.b16 %v556
    %v596 = vunpack.c.l.b16 %v557
    %v597 = vunpack.c.l.b16 %v558
    %v598 = vunpack.c.l.b16 %v559
    %v599 = vunpack.c.l.b16 %v560
    %v600 = vunpack.c.l.b16 %v561
    %v601 = vunpack.c.l.b16 %v562
    %v602 = vunpack.c.l.b16 %v563
    %v603 = vunpack.c.l.b16 %v564
    %v604 = vunpack.c.l.b16 %v565
    %v605 = vunpack.c.l.b16 %v566
    %v606 = vunpack.c.l.b16 %v567
    %v607 = vunpack.c.l.b16 %v568
    %v608 = vunpack.c.l.b16 %v569
    %v609 = vunpack.c.l.b16 %v570
    %v610 = vpack.c.b16 %v595, %v594
    %v611 = vpack.c.b16 %v597, %v596
    %v612 = vpack.c.b16 %v599, %v598
    %v613 = vpack.c.b16 %v601, %v600
    %v614 = vpack.c.b16 %v603, %v602
    %v615 = vpack.c.b16 %v605, %v604
    %v616 = vpack.c.b16 %v607, %v606
    %v617 = vpack.c.b16 %v609, %v608
    %626 = vmatprep.subr.bf16.mxu0 0
    %627 = vmatpush1.bf16.msra.mxu0 %v617
    %628 = vmatprep.subr.bf16.mxu0 0
    %629 = vmatpush1.bf16.msra.mxu0 %v616
    %630 = vmatprep.subr.bf16.mxu0 0
    %631 = vmatpush1.bf16.msra.mxu0 %v615
    %632 = vmatprep.subr.bf16.mxu0 0
    %633 = vmatpush1.bf16.msra.mxu0 %v614
    %634 = vmatprep.subr.bf16.mxu0 0
    %635 = vmatpush1.bf16.msra.mxu0 %v613
    %636 = vmatprep.subr.bf16.mxu0 0
    %637 = vmatpush1.bf16.msra.mxu0 %v612
    %638 = vmatprep.subr.bf16.mxu0 0
    %639 = vmatpush1.bf16.msra.mxu0 %v611
    %640 = vmatprep.subr.bf16.mxu0 0
    %641 = vmatpush1.bf16.msra.mxu0 %v610
    %642 = vmatprep.subr.bf16.mxu0 0
    %643 = vmatpush2.bf16.msra.mxu0 0
    %644 = vmatprep.subr.bf16.mxu0 0
    %645 = vmatpush2.bf16.msra.mxu0 0
    %646 = vmatprep.subr.bf16.mxu0 0
    %647 = vmatpush2.bf16.msra.mxu0 0
    %648 = vmatprep.subr.bf16.mxu0 0
    %649 = vmatpush2.bf16.msra.mxu0 0
    %650 = vmatprep.subr.bf16.mxu0 0
    %651 = vmatpush2.bf16.msra.mxu0 0
    %652 = vmatprep.subr.bf16.mxu0 0
    %653 = vmatpush2.bf16.msra.mxu0 0
    %654 = vmatprep.subr.bf16.mxu0 0
    %655 = vmatpush2.bf16.msra.mxu0 0
    %656 = vmatprep.subr.bf16.mxu0 0
    %657 = vmatpush2.bf16.msra.mxu0 0
    %658 = vmatprep.mubr.bf16.mxu0 0
    %659 = vmatmul.mubr.bf16.gmra.mxu0 %v554
    %v660 = vpop.f32.mrf.mxu0
    %v661 = vadd.f32 %v576, %v660
    %v662 = vpop.f32.mrf.mxu0
    %v663 = vpop.f32.mrf.mxu0
    %v664 = vpop.f32.mrf.mxu0
    %665 = vdwg.mxu0
    %v666 = vpack.c.bf16 %v661, %v661
    %vm667 = vcmask 125952
    %668 = vst.msk [vmem:[#allocation5] sm:$0xf] %vm667, %v666
    // Predicated region
    $region30: #{tpu_custom_call.1} parent=1 // pred_check
      _
    $region31: #{tpu_custom_call.1} parent=1 // pred_check_branch
      %670 = sbr.rel (0) target = $region33
    $region32: #{tpu_custom_call.1} parent=1 // pred_region
      %s672 = ssub.s32 64, 64
      %673 = vsyncadd [#allocation4], %s672
      %s675 = sshll.u32 [#allocation5], 4
      %s676 = int_to_ptr.vmem [resolvable:$true] %s675
      %678 = dma.vmem_to_hbm [thread:$0]  %s676, 64, %s6, [#allocation4]
    $region33: #{tpu_custom_call.1} parent=1 // pred_fallthru
      _
    // Predicated region
    $region34: #{tpu_custom_call.1} parent=1 // pred_check
      _
    $region35: #{tpu_custom_call.1} parent=1 // pred_check_branch
      %680 = sbr.rel (0) target = $region37
    $region36: #{tpu_custom_call.1} parent=1 // pred_region
      %681 = dma.done [#allocation4], 64
    $region37: #{tpu_custom_call.1} parent=1 // pred_fallthru
      _
    %682 = vsyncpa [#allocation3], 1
    %683 = vsyncpa [#allocation4], 1

</llo_original>
